<compile_context>
chip_gen: v5e
topology: v5e:2x2
jax: 0.10.0
libtpu: 0.0.40
codegen_flags: <defaults>
</compile_context>

<pallas_src>
import functools
import math

import jax
import jax.numpy as jnp
from jax.experimental import pallas as pl
from jax.experimental.pallas import tpu as pltpu


def _round_up(n, m):
    return -(-n // m) * m


@functools.lru_cache(maxsize=1)
def _num_tensorcores_per_device():
    """Best-effort query of TensorCores per addressable device (v7x == 2)."""
    try:
        info = pltpu.get_tpu_info()
        for attr in ("num_cores", "num_tensorcores", "num_tensor_cores",
                     "tensor_cores_per_chip", "cores_per_chip"):
            v = getattr(info, attr, None)
            if isinstance(v, int) and v > 0:
                return v
    except Exception:
        pass
    try:
        kind = (getattr(jax.devices()[0], "device_kind", "") or "").lower()
        if "v7" in kind:
            return 2
    except Exception:
        pass
    return 1


def _rope_kernel(inv_freq_ref, offset_ref, cos_ref, sin_ref, *, k):
    """Writes one (row_tile, W) slab of the packed cos/sin tables.

    inv_freq_ref: (1, W) f32 resident row; inv_freq_row[l] = inv_freq[(l % dim) % (dim//2)]
    offset_ref:   (1, W) f32 resident row; offset_row[l]  = l // dim
    cos_ref/sin_ref: (row_tile, W) output blocks.  Each lane row packs
                  k = W // dim consecutive sequence positions (W % 128 == 0).
    """
    i = pl.program_id(0)
    row_tile = cos_ref.shape[0]

    # Global packed-row index -> base sequence position of the row.  Exact
    # integers, converted once on a (row_tile, 1) column; lane broadcast of a
    # column is cheap and hoisted by the compiler.
    row_col = jax.lax.broadcasted_iota(jnp.int32, (row_tile, 1), 0)
    base_pos = (i * (row_tile * k) + row_col * k).astype(jnp.float32)  # (row_tile, 1)

    if k == 1:
        pos = base_pos                         # broadcasts against (1, W) below
    else:
        pos = base_pos + offset_ref[...]       # exact integer positions (row_tile, W)

    freqs = pos * inv_freq_ref[...]            # single rounding; matches reference
    cos_ref[...] = jnp.cos(freqs).astype(cos_ref.dtype)
    sin_ref[...] = jnp.sin(freqs).astype(sin_ref.dtype)


@functools.partial(
    jax.jit, static_argnames=("k", "row_tile", "rows", "w", "out_dtype"))
def _build_rope_tables(inv_freq_row, offset_row, *, k, row_tile, rows, w,
                       out_dtype):
    grid = (rows // row_tile,)
    kernel = functools.partial(_rope_kernel, k=k)
    cos, sin = pl.pallas_call(
        kernel,
        out_shape=(
            jax.ShapeDtypeStruct((rows, w), out_dtype),
            jax.ShapeDtypeStruct((rows, w), out_dtype),
        ),
        grid_spec=pltpu.PrefetchScalarGridSpec(
            num_scalar_prefetch=0,
            grid=grid,
            in_specs=[
                # tiny (1, W) rows, same block every step -> stay resident
                pl.BlockSpec((1, w), lambda i: (0, 0)),
                pl.BlockSpec((1, w), lambda i: (0, 0)),
            ],
            out_specs=[
                pl.BlockSpec((row_tile, w), lambda i: (i, 0)),
                pl.BlockSpec((row_tile, w), lambda i: (i, 0)),
            ],
        ),
        compiler_params=pltpu.CompilerParams(
            dimension_semantics=("parallel",)),
    )(inv_freq_row, offset_row)
    return cos, sin


class RotaryEmbedding:
    """JAX/Pallas port of pefty_llama RotaryEmbedding."""

    _SUBLANE = 16         # bf16-friendly row granularity (also a multiple of 8)
    _MAX_ROW_TILE = 1024  # rows of W lanes per grid step (multiple of 16)
    _MAX_LANE_W = 512     # cap on packed lane width (multiple of 128)

    def __init__(self, dim, max_position_embeddings=2048, base=10000):
        assert dim % 2 == 0
        self.dim = dim
        self.base = float(base)
        self.max_seq_len_cached = max_position_embeddings
        # deterministic "buffer" init, exactly as in the PyTorch __init__
        self.inv_freq = 1.0 / self.base ** (
            jnp.arange(0, dim, 2, dtype=jnp.float32) / dim)      # (dim//2,)
        self._built = {}   # dtype name -> (built_len, cos (L, dim), sin (L, dim))
        self._views = {}   # (seq_len, dtype name) -> (cos view, sin view)

    # ---- planning -----------------------------------------------------------
    def _plan(self, cache_len):
        dim = self.dim
        lcm = dim * (128 // math.gcd(dim, 128))
        if lcm <= self._MAX_LANE_W:
            w, k = lcm, lcm // dim        # pack k positions per 128-lane-multiple row
        else:
            # TODO(synk): lane-sparse fallback for awkward large dims; last dim
            # not a multiple of 128 -> masked partial stores on this path only.
            w, k = dim, 1
        rows = max(_round_up(-(-cache_len // k), self._SUBLANE), self._SUBLANE)
        cores = _num_tensorcores_per_device()
        if rows <= self._MAX_ROW_TILE:
            if cores > 1 and rows >= 2 * self._SUBLANE:
                # split in two so both v7x TensorCores get work
                row_tile = _round_up(-(-rows // 2), self._SUBLANE)
                rows = 2 * row_tile
            else:
                row_tile = rows           # single maximal tile on 1-TC chips
        else:
            row_tile = self._MAX_ROW_TILE
            step = row_tile * (2 if cores > 1 else 1)
            rows = _round_up(rows, step)  # keep the grid core-balanced on v7x
        return w, k, rows, row_tile

    # ---- table construction -------------------------------------------------
    def _get_tables(self, cache_len, dtype):
        key = jnp.dtype(dtype).name
        hit = self._built.get(key)
        if hit is not None and hit[0] >= cache_len:
            return hit[1], hit[2]

        w, k, rows, row_tile = self._plan(cache_len)
        # Host-precomputed (1, W) rows (tiny, built once):
        #   inv_freq_row[l] = inv_freq[(l % dim) % (dim//2)]  (concat pattern tiled k times)
        #   offset_row[l]   = float(l // dim)                 (per-lane position offset)
        emb_row = jnp.concatenate([self.inv_freq, self.inv_freq])       # (dim,)
        inv_freq_row = jnp.tile(emb_row, k).reshape(1, w)
        offset_row = jnp.repeat(
            jnp.arange(k, dtype=jnp.float32), self.dim).reshape(1, w)

        cos, sin = _build_rope_tables(
            inv_freq_row, offset_row, k=k, row_tile=row_tile, rows=rows, w=w,
            out_dtype=jnp.dtype(dtype))

        built_len = rows * k
        # (rows, W) row-major == (rows*k, dim) row-major -> layout-free reshape.
        cos = cos.reshape(built_len, self.dim)
        sin = sin.reshape(built_len, self.dim)
        self._built[key] = (built_len, cos, sin)
        return cos, sin

    # ---- forward ------------------------------------------------------------
    def __call__(self, x, seq_len=None):
        if seq_len is None:
            seq_len = x.shape[-2]
        seq_len = int(seq_len)
        if seq_len > self.max_seq_len_cached:
            self.max_seq_len_cached = seq_len
        vkey = (seq_len, jnp.dtype(x.dtype).name)
        hit = self._views.get(vkey)
        if hit is not None:                      # steady state: no device work
            return hit
        cos, sin = self._get_tables(self.max_seq_len_cached, x.dtype)
        view = (cos[:seq_len][None, None, :, :],
                sin[:seq_len][None, None, :, :])
        self._views[vkey] = view
        return view


# ---- pure-JAX reference -----------------------------------------------------
def _reference(dim, base, seq_len, dtype):
    inv_freq = 1.0 / base ** (jnp.arange(0, dim, 2, dtype=jnp.float32) / dim)
    t = jnp.arange(seq_len, dtype=jnp.float32)
    freqs = jnp.einsum("i,j->ij", t, inv_freq)
    emb = jnp.concatenate([freqs, freqs], axis=-1)
    return (jnp.cos(emb)[None, None].astype(dtype),
            jnp.sin(emb)[None, None].astype(dtype))


if __name__ == "__main__":
    key = jax.random.PRNGKey(0)

    # --- Case 1: head_dim < 128 (packed lane-dense path), f32 ---------------
    batch, n_heads, seq_len, head_dim = 2, 4, 8, 32
    x = jax.random.normal(key, (batch, n_heads, seq_len, head_dim),
                          dtype=jnp.float32)
    rope = RotaryEmbedding(dim=head_dim, max_position_embeddings=128)
    cos, sin = rope(x, seq_len=seq_len)
    cos = jax.block_until_ready(cos)
    sin = jax.block_until_ready(sin)

    ref_cos, ref_sin = _reference(head_dim, 10000.0, seq_len, x.dtype)
    assert cos.shape == (1, 1, seq_len, head_dim), cos.shape
    assert sin.shape == (1, 1, seq_len, head_dim), sin.shape
    assert jnp.allclose(cos, ref_cos, atol=1e-5, rtol=1e-5)
    assert jnp.allclose(sin, ref_sin, atol=1e-5, rtol=1e-5)

    # second call reuses the cached view (no kernel re-run, no device slicing)
    cos2, sin2 = rope(x, seq_len=4)
    assert cos2.shape == (1, 1, 4, head_dim)
    assert jnp.allclose(cos2, ref_cos[:, :, :4], atol=1e-5, rtol=1e-5)
    cos2b, _ = rope(x, seq_len=4)
    assert cos2b is cos2   # pure dict lookup in steady state

    # --- Case 2: head_dim == 128 (already lane-dense), bf16 straight out ----
    head_dim2, seq2 = 128, 16
    x2 = jax.random.normal(key, (1, 2, seq2, head_dim2), dtype=jnp.bfloat16)
    rope2 = RotaryEmbedding(dim=head_dim2, max_position_embeddings=256)
    cos_b, sin_b = rope2(x2, seq_len=seq2)
    cos_b = jax.block_until_ready(cos_b)
    sin_b = jax.block_until_ready(sin_b)

    ref_cos_b, ref_sin_b = _reference(head_dim2, 10000.0, seq2, jnp.bfloat16)
    assert cos_b.dtype == jnp.bfloat16 and sin_b.dtype == jnp.bfloat16
    assert cos_b.shape == (1, 1, seq2, head_dim2)
    assert jnp.allclose(cos_b.astype(jnp.float32),
                        ref_cos_b.astype(jnp.float32), atol=2e-2)
    assert jnp.allclose(sin_b.astype(jnp.float32),
                        ref_sin_b.astype(jnp.float32), atol=2e-2)

    # --- Case 3: non-power-of-two head_dim (96 -> W = lcm(96,128) = 384) ----
    head_dim3, seq3 = 96, 8
    x3 = jax.random.normal(key, (1, 2, seq3, head_dim3), dtype=jnp.float32)
    rope3 = RotaryEmbedding(dim=head_dim3, max_position_embeddings=64)
    cos_c, sin_c = rope3(x3, seq_len=seq3)
    cos_c = jax.block_until_ready(cos_c)
    sin_c = jax.block_until_ready(sin_c)

    ref_cos_c, ref_sin_c = _reference(head_dim3, 10000.0, seq3, jnp.float32)
    assert cos_c.shape == (1, 1, seq3, head_dim3)
    assert jnp.allclose(cos_c, ref_cos_c, atol=1e-5, rtol=1e-5)
    assert jnp.allclose(sin_c, ref_sin_c, atol=1e-5, rtol=1e-5)

    print("KERNEL_OK")
</pallas_src>

<mosaic_0001>
module attributes {stable_mosaic.version = 11 : i64} {
  func.func @_rope_kernel(%arg0: i32, %arg1: memref<1x128xf32, #tpu.memory_space<vmem>>, %arg2: memref<1x128xf32, #tpu.memory_space<vmem>>, %arg3: memref<32x128xf32, #tpu.memory_space<vmem>>, %arg4: memref<32x128xf32, #tpu.memory_space<vmem>>) attributes {dimension_semantics = [#tpu.dimension_semantics<parallel>], iteration_bounds = array<i64: 1>, scalar_prefetch = 0 : i64, scratch_operands = 0 : i64, tpu.core_type = #tpu.core_type<tc>, window_params = [{pipeline_mode = #tpu.pipeline_mode<synchronous>, transform_indices = @transform_0, window_bounds = array<i64: 1, 128>}, {pipeline_mode = #tpu.pipeline_mode<synchronous>, transform_indices = @transform_1, window_bounds = array<i64: 1, 128>}, {transform_indices = @transform_2, window_bounds = array<i64: 32, 128>}, {transform_indices = @transform_3, window_bounds = array<i64: 32, 128>}]} {
    %0 = tpu.iota {dimensions = array<i32: 0>} : vector<32x1xi32>
    %c128_i32 = arith.constant 128 : i32
    %1 = arith.muli %arg0, %c128_i32 : i32
    %c4_i32 = arith.constant 4 : i32
    %2 = vector.broadcast %c4_i32 : i32 to vector<32x1xi32>
    %3 = arith.muli %0, %2 : vector<32x1xi32>
    %4 = vector.broadcast %1 : i32 to vector<32x1xi32>
    %5 = arith.addi %4, %3 : vector<32x1xi32>
    %6 = arith.sitofp %5 : vector<32x1xi32> to vector<32x1xf32>
    %c0 = arith.constant 0 : index
    %c0_0 = arith.constant 0 : index
    %7 = vector.load %arg2[%c0, %c0_0] : memref<1x128xf32, #tpu.memory_space<vmem>>, vector<1x128xf32>
    %8 = vector.broadcast %6 : vector<32x1xf32> to vector<32x128xf32>
    %9 = vector.broadcast %7 : vector<1x128xf32> to vector<32x128xf32>
    %10 = arith.addf %8, %9 : vector<32x128xf32>
    %c0_1 = arith.constant 0 : index
    %c0_2 = arith.constant 0 : index
    %11 = vector.load %arg1[%c0_1, %c0_2] : memref<1x128xf32, #tpu.memory_space<vmem>>, vector<1x128xf32>
    %12 = vector.broadcast %11 : vector<1x128xf32> to vector<32x128xf32>
    %13 = arith.mulf %10, %12 : vector<32x128xf32>
    %14 = math.cos %13 : vector<32x128xf32>
    %c0_3 = arith.constant 0 : index
    %c0_4 = arith.constant 0 : index
    %15 = vector.load %arg3[%c0_3, %c0_4] : memref<32x128xf32, #tpu.memory_space<vmem>>, vector<32x128xf32>
    tpu.vector_store %arg3[%c0_3, %c0_4], %14 {strides = array<i32>} : memref<32x128xf32, #tpu.memory_space<vmem>>, vector<32x128xf32>,
    %16 = math.sin %13 : vector<32x128xf32>
    %c0_5 = arith.constant 0 : index
    %c0_6 = arith.constant 0 : index
    %17 = vector.load %arg4[%c0_5, %c0_6] : memref<32x128xf32, #tpu.memory_space<vmem>>, vector<32x128xf32>
    tpu.vector_store %arg4[%c0_5, %c0_6], %16 {strides = array<i32>} : memref<32x128xf32, #tpu.memory_space<vmem>>, vector<32x128xf32>,
    return
  }
  func.func @transform_0(%arg0: i32) -> (i32, i32) {
    %c0_i32 = arith.constant 0 : i32
    %c0_i32_0 = arith.constant 0 : i32
    %c0_i32_1 = arith.constant 0 : i32
    return %c0_i32, %c0_i32_0 : i32, i32
  }
  func.func @transform_1(%arg0: i32) -> (i32, i32) {
    %c0_i32 = arith.constant 0 : i32
    %c0_i32_0 = arith.constant 0 : i32
    %c0_i32_1 = arith.constant 0 : i32
    return %c0_i32, %c0_i32_0 : i32, i32
  }
  func.func @transform_2(%arg0: i32) -> (i32, i32) {
    %c0_i32 = arith.constant 0 : i32
    %c0_i32_0 = arith.constant 0 : i32
    return %arg0, %c0_i32 : i32, i32
  }
  func.func @transform_3(%arg0: i32) -> (i32, i32) {
    %c0_i32 = arith.constant 0 : i32
    %c0_i32_0 = arith.constant 0 : i32
    return %arg0, %c0_i32 : i32, i32
  }
}

</mosaic_0001>

<llo_original>
// kernel: _build_rope_tables.1
$region0: #{_build_rope_tables.1}
  #allocation0 [shape = 'u32[]', space=smem, size = 0x4, offset = 0x4, fixed_abs, tag = 'smem constant byte address 0x4 - core index']
  #allocation1 [shape = 'u32[72,128]{1,0:T(1,128)}', space=vmem, size = 0x9000, scoped, tag = 'internal scratch']
  %s0 = inlined_call_operand.hbm [shape: f32[1,128], index: 0, kind: input, shape index: {}]
  %s1 = inlined_call_operand.hbm [shape: f32[1,128], index: 1, kind: input, shape index: {}]
  %s2 = inlined_call_operand.hbm [shape: f32[32,128], index: 2, kind: output, shape index: {0}]
  %s3 = inlined_call_operand.hbm [shape: f32[32,128], index: 3, kind: output, shape index: {1}]
  %4 = xla_tuple %s2, %s3
  %s5 = sld [smem:[#allocation0]]
  $region34: #{_build_rope_tables.1} parent=0
    _
  %s7 = ssub.s32 1, %s5
  %s8 = scalar_select 0, %s7, %s5
  $region1: #{_build_rope_tables.1} parent=0
    #allocation2 [shape = 'u8[512]{0}', space=vmem, size = 0x400, scoped, tag = 'input window, operand 0, single buffered']
    #allocation3 [shape = 's32[1]{0}', space=sflag, size = 0x4, scoped, tag = 'scoped memory for _build_rope_tables.1']
    #allocation4 [shape = 's32[1]{0}', space=sflag, size = 0x4, scoped, tag = 'scoped memory for _build_rope_tables.1']
    #allocation5 [shape = 'u8[512]{0}', space=vmem, size = 0x400, scoped, tag = 'input window, operand 1, single buffered']
    #allocation6 [shape = 's32[1]{0}', space=sflag, size = 0x4, scoped, tag = 'scoped memory for _build_rope_tables.1']
    #allocation7 [shape = 'u8[16384]{0}', space=vmem, size = 0x4000, scoped, tag = 'output window, operand 0, single buffered']
    #allocation8 [shape = 'u8[16384]{0}', space=vmem, size = 0x4000, scoped, tag = 'output window, operand 1, single buffered']
    #allocation9 [shape = 's32[1]{0}', space=sflag, size = 0x4, scoped, tag = 'scoped memory for _build_rope_tables.1']
    %9 = vsyncpa [#allocation3], 0
    %10 = vsyncpa [#allocation6], 0
    %11 = vsyncpa [#allocation4], 0
    %12 = vsyncpa [#allocation9], 0
    // Predicated region
    $region2: #{_build_rope_tables.1} parent=1 // pred_check
      _
    $region3: #{_build_rope_tables.1} parent=1 // pred_check_branch
      %14 = sbr.rel (0) target = $region5
    $region4: #{_build_rope_tables.1} parent=1 // pred_region
      %16 = vsyncadd [#allocation3], 0
      %s18 = sshll.u32 %s0, 4
      %s19 = int_to_ptr.hbm [resolvable:$true] %s18
      %s20 = sshll.u32 [#allocation2], 4
      %s21 = int_to_ptr.vmem [resolvable:$true] %s20
      %23 = dma.hbm_to_vmem [thread:$0]  %s19, 16, %s21, [#allocation3]
    $region5: #{_build_rope_tables.1} parent=1 // pred_fallthru
      _
    // Predicated region
    $region6: #{_build_rope_tables.1} parent=1 // pred_check
      _
    $region7: #{_build_rope_tables.1} parent=1 // pred_check_branch
      %25 = sbr.rel (0) target = $region9
    $region8: #{_build_rope_tables.1} parent=1 // pred_region
      %27 = vsyncadd [#allocation6], 0
      %s29 = sshll.u32 %s1, 4
      %s30 = int_to_ptr.hbm [resolvable:$true] %s29
      %s31 = sshll.u32 [#allocation5], 4
      %s32 = int_to_ptr.vmem [resolvable:$true] %s31
      %34 = dma.hbm_to_vmem [thread:$0]  %s30, 16, %s32, [#allocation6]
    $region9: #{_build_rope_tables.1} parent=1 // pred_fallthru
      _
    // Predicated region
    $region10: #{_build_rope_tables.1} parent=1 // pred_check
      _
    $region11: #{_build_rope_tables.1} parent=1 // pred_check_branch
      %36 = sbr.rel (0) target = $region13
    $region12: #{_build_rope_tables.1} parent=1 // pred_region
      %38 = dma.done [#allocation3], 16
    $region13: #{_build_rope_tables.1} parent=1 // pred_fallthru
      _
    // Predicated region
    $region14: #{_build_rope_tables.1} parent=1 // pred_check
      _
    $region15: #{_build_rope_tables.1} parent=1 // pred_check_branch
      %40 = sbr.rel (0) target = $region17
    $region16: #{_build_rope_tables.1} parent=1 // pred_region
      %42 = dma.done [#allocation6], 16
    $region17: #{_build_rope_tables.1} parent=1 // pred_fallthru
      _
    %v43 = vlaneseq
    %v44 = vshrl.u32 %v43, 7
    %v45 = vadd.s32 %v44, 8
    %v46 = vadd.s32 %v44, 16
    %v47 = vadd.s32 %v44, 24
    %s48 = smul.u32 0, 128
    %v49 = vmul.u32 %v44, 4
    %v50 = vmul.u32 %v45, 4
    %v51 = vmul.u32 %v46, 4
    %v52 = vmul.u32 %v47, 4
    %v53 = vstv %s48
    %v54 = vadd.s32 %v53, %v49
    %v55 = vadd.s32 %v53, %v50
    %v56 = vadd.s32 %v53, %v51
    %v57 = vadd.s32 %v53, %v52
    %v58 = vcvt.s32.f32 %v54
    %v59 = vcvt.s32.f32 %v55
    %v60 = vcvt.s32.f32 %v56
    %v61 = vcvt.s32.f32 %v57
    %v62 = vld [vmem:[#allocation5] sm:$0x1]
    %v64 = vperm.slane %v62, 0
    %v66 = vadd.f32 %v58, %v64
    %v67 = vadd.f32 %v59, %v64
    %v68 = vadd.f32 %v60, %v64
    %v69 = vadd.f32 %v61, %v64
    %v70 = vld [vmem:[#allocation2] sm:$0x1]
    %v72 = vperm.slane %v70, 0
    %v74 = vmul.f32 %v66, %v72
    %v75 = vmul.f32 %v67, %v72
    %v76 = vmul.f32 %v68, %v72
    %v77 = vmul.f32 %v69, %v72
    %v78 = vand.u32 2147483647, %v74
    %vm79 = vcmp.le.f32.partialorder %v78, 0.7853982
    %vm80 = vcmp.lt.s32.totalorder %v74, 0
    %v81 = vand.u32 %v74, 2139095040
    %v82 = vshrl.u32 %v81, 23
    %v83 = vsub.s32 %v82, 127
    %v84 = vand.u32 2147483647, %v74
    %v85 = vand.u32 %v84, 8388607
    %v86 = vor.u32 %v85, 8388608
    %v87 = vsub.s32 0, %v86
    %v88 = vadd.s32 %v83, 1
    %vm89 = vcmp.gt.s32.totalorder %v88, 0
    %v90 = vsel %vm89, %v88, 0
    %v91 = vshrl.u32 %v90, 5
    %v92 = vand.u32 %v90, 31
    %v93 = vsub.s32 32, %v92
    %v94 = vshrl.u32 683565275, %v93
    %v95 = vshll.u32 683565275, %v92
    %v96 = vshrl.u32 2475754826, %v93
    %v97 = vor.u32 %v95, %v96
    %v98 = vshll.u32 2475754826, %v92
    %v99 = vshrl.u32 2131351028, %v93
    %v100 = vor.u32 %v98, %v99
    %v101 = vshll.u32 2131351028, %v92
    %v102 = vshrl.u32 2102212464, %v93
    %v103 = vor.u32 %v101, %v102
    %v104 = vshll.u32 2102212464, %v92
    %v105 = vshrl.u32 920167782, %v93
    %v106 = vor.u32 %v104, %v105
    %v107 = vshll.u32 920167782, %v92
    %v108 = vshrl.u32 1326507024, %v93
    %v109 = vor.u32 %v107, %v108
    %vm110 = vcmp.lt.s32.totalorder %v91, 1
    %vm111 = vcmp.lt.s32.totalorder %v91, 2
    %vm112 = vcmp.lt.s32.totalorder %v91, 3
    %vm113 = vcmp.lt.s32.totalorder %v91, 4
    %v114 = vsel %vm110, %v94, %v97
    %v115 = vsel %vm113, %v103, 2102212464
    %v116 = vsel %vm112, %v100, %v115
    %v117 = vsel %vm111, %v114, %v116
    %v118 = vsel %vm110, %v97, %v100
    %v119 = vsel %vm113, %v106, 920167782
    %v120 = vsel %vm112, %v103, %v119
    %v121 = vsel %vm111, %v118, %v120
    %v122 = vsel %vm110, %v100, %v103
    %v123 = vsel %vm113, %v109, 1326507024
    %v124 = vsel %vm112, %v106, %v123
    %v125 = vsel %vm111, %v122, %v124
    %v126 = vshll.u32 %v86, 8
    %v127 = vand.u32 %v126, 65535
    %v128 = vshrl.u32 %v126, 16
    %v129 = vand.u32 %v125, 65535
    %v130 = vshrl.u32 %v125, 16
    %v131 = vmul.u32 %v127, %v129
    %v132 = vmul.u32 %v127, %v130
    %v133 = vmul.u32 %v128, %v129
    %v134 = vmul.u32 %v128, %v130
    %v135 = vshll.u32 %v132, 16
    %v136 = vshrl.u32 %v132, 16
    %v137 = vshll.u32 %v133, 16
    %v138 = vshrl.u32 %v133, 16
    %vm139 = vc.u32 %v131, %v135
    %v140 = vsel %vm139, 1, 0
    %v141 = vadd.s32 %v131, %v135
    %v142 = vadd.s32 %v134, %v140
    %vm143 = vc.u32 %v141, %v137
    %v144 = vsel %vm143, 1, 0
    %v145 = vadd.s32 %v141, %v137
    %v146 = vadd.s32 %v142, %v144
    %v147 = vadd.s32 %v146, %v136
    %v148 = vadd.s32 %v147, %v138
    %v149 = vand.u32 %v126, 65535
    %v150 = vshrl.u32 %v126, 16
    %v151 = vand.u32 %v121, 65535
    %v152 = vshrl.u32 %v121, 16
    %v153 = vmul.u32 %v149, %v151
    %v154 = vmul.u32 %v149, %v152
    %v155 = vmul.u32 %v150, %v151
    %v156 = vmul.u32 %v150, %v152
    %v157 = vshll.u32 %v154, 16
    %v158 = vshrl.u32 %v154, 16
    %v159 = vshll.u32 %v155, 16
    %v160 = vshrl.u32 %v155, 16
    %vm161 = vc.u32 %v153, %v157
    %v162 = vsel %vm161, 1, 0
    %v163 = vadd.s32 %v153, %v157
    %v164 = vadd.s32 %v156, %v162
    %vm165 = vc.u32 %v163, %v159
    %v166 = vsel %vm165, 1, 0
    %v167 = vadd.s32 %v163, %v159
    %v168 = vadd.s32 %v164, %v166
    %v169 = vadd.s32 %v168, %v158
    %v170 = vadd.s32 %v169, %v160
    %v171 = vmul.u32 %v126, %v117
    %v172 = vadd.s32 %v148, %v167
    %vm173 = vc.u32 %v148, %v167
    %v174 = vadd.s32 %v170, 1
    %v175 = vsel %vm173, %v174, %v170
    %v176 = vadd.s32 %v171, %v175
    %v177 = vadd.s32 %v176, 536870912
    %v178 = vshrl.u32 %v177, 30
    %v179 = vshll.u32 %v178, 30
    %v180 = vsub.s32 %v176, %v179
    %vm181 = vcmp.lt.s32.totalorder %v180, 0
    %v182 = vsub.s32 0, %v180
    %v183 = vsel %vm181, %v182, %v180
    %v184 = vclz %v183
    %v185 = vsub.s32 %v184, 2
    %vm186 = vcmp.gt.s32.totalorder 0, %v185
    %v187 = vsel %vm186, 0, %v185
    %v188 = vsub.s32 32, %v187
    %v189 = vshll.u32 %v180, %v187
    %v190 = vshrl.u32 %v172, %v188
    %v191 = vor.u32 %v189, %v190
    %v192 = vsub.s32 4294967266, %v187
    %v193 = vadd.s32 %v192, 127
    %v194 = vshll.u32 %v193, 23
    %v195 = vor.u32 4788187, %v194
    %v196 = vand.u32 2147483647, %v195
    %v198 = vcvt.s32.f32 %v191
    %v199 = vmul.f32 %v198, %v196
    %v200 = vxor.u32 %v199, 2147483648
    %v201 = vsel %vm80, %v200, %v199
    %v202 = vsub.s32 4, %v178
    %v203 = vsel %vm80, %v202, %v178
    %v204 = vsel %vm79, %v74, %v201
    %v205 = vsel %vm79, 0, %v203
    %v206 = vmul.f32 %v204, %v204
    %v207 = vmul.f32 %v206, -0.001358992
    %v208 = vadd.f32 %v207, 0.041655596
    %v209 = vmul.f32 %v206, %v208
    %v210 = vadd.f32 %v209, -0.4999988
    %v211 = vmul.f32 %v206, %v210
    %v212 = vadd.f32 1.0, %v211
    %v213 = vmul.f32 %v204, %v204
    %v214 = vmul.f32 %v213, -0.00019511016
    %v215 = vadd.f32 %v214, 0.008332121
    %v216 = vmul.f32 %v213, %v215
    %v217 = vadd.f32 %v216, -0.16666654
    %v218 = vmul.f32 %v213, %v217
    %v219 = vadd.f32 %v218, 1.0
    %v220 = vmul.f32 %v219, %v204
    %vm221 = vweird.f32 %v74
    %v222 = vand.u32 %v205, 3
    %vm223 = vcmp.lt.s32.totalorder %v222, 2
    %vm224 = vcmp.eq.s32.totalorder %v222, 0
    %v225 = vxor.u32 %v220, 2147483648
    %v226 = vsel %vm224, %v212, %v225
    %vm227 = vcmp.eq.s32.totalorder %v222, 2
    %v228 = vxor.u32 %v212, 2147483648
    %v229 = vsel %vm227, %v228, %v220
    %v230 = vsel %vm223, %v226, %v229
    %v231 = vsel %vm221, nan, %v230
    %v232 = vand.u32 2147483647, %v75
    %vm233 = vcmp.le.f32.partialorder %v232, 0.7853982
    %vm234 = vcmp.lt.s32.totalorder %v75, 0
    %v235 = vand.u32 %v75, 2139095040
    %v236 = vshrl.u32 %v235, 23
    %v237 = vsub.s32 %v236, 127
    %v238 = vand.u32 2147483647, %v75
    %v239 = vand.u32 %v238, 8388607
    %v240 = vor.u32 %v239, 8388608
    %v241 = vsub.s32 0, %v240
    %v242 = vadd.s32 %v237, 1
    %vm243 = vcmp.gt.s32.totalorder %v242, 0
    %v244 = vsel %vm243, %v242, 0
    %v245 = vshrl.u32 %v244, 5
    %v246 = vand.u32 %v244, 31
    %v247 = vsub.s32 32, %v246
    %v248 = vshrl.u32 683565275, %v247
    %v249 = vshll.u32 683565275, %v246
    %v250 = vshrl.u32 2475754826, %v247
    %v251 = vor.u32 %v249, %v250
    %v252 = vshll.u32 2475754826, %v246
    %v253 = vshrl.u32 2131351028, %v247
    %v254 = vor.u32 %v252, %v253
    %v255 = vshll.u32 2131351028, %v246
    %v256 = vshrl.u32 2102212464, %v247
    %v257 = vor.u32 %v255, %v256
    %v258 = vshll.u32 2102212464, %v246
    %v259 = vshrl.u32 920167782, %v247
    %v260 = vor.u32 %v258, %v259
    %v261 = vshll.u32 920167782, %v246
    %v262 = vshrl.u32 1326507024, %v247
    %v263 = vor.u32 %v261, %v262
    %vm264 = vcmp.lt.s32.totalorder %v245, 1
    %vm265 = vcmp.lt.s32.totalorder %v245, 2
    %vm266 = vcmp.lt.s32.totalorder %v245, 3
    %vm267 = vcmp.lt.s32.totalorder %v245, 4
    %v268 = vsel %vm264, %v248, %v251
    %v269 = vsel %vm267, %v257, 2102212464
    %v270 = vsel %vm266, %v254, %v269
    %v271 = vsel %vm265, %v268, %v270
    %v272 = vsel %vm264, %v251, %v254
    %v273 = vsel %vm267, %v260, 920167782
    %v274 = vsel %vm266, %v257, %v273
    %v275 = vsel %vm265, %v272, %v274
    %v276 = vsel %vm264, %v254, %v257
    %v277 = vsel %vm267, %v263, 1326507024
    %v278 = vsel %vm266, %v260, %v277
    %v279 = vsel %vm265, %v276, %v278
    %v280 = vshll.u32 %v240, 8
    %v281 = vand.u32 %v280, 65535
    %v282 = vshrl.u32 %v280, 16
    %v283 = vand.u32 %v279, 65535
    %v284 = vshrl.u32 %v279, 16
    %v285 = vmul.u32 %v281, %v283
    %v286 = vmul.u32 %v281, %v284
    %v287 = vmul.u32 %v282, %v283
    %v288 = vmul.u32 %v282, %v284
    %v289 = vshll.u32 %v286, 16
    %v290 = vshrl.u32 %v286, 16
    %v291 = vshll.u32 %v287, 16
    %v292 = vshrl.u32 %v287, 16
    %vm293 = vc.u32 %v285, %v289
    %v294 = vsel %vm293, 1, 0
    %v295 = vadd.s32 %v285, %v289
    %v296 = vadd.s32 %v288, %v294
    %vm297 = vc.u32 %v295, %v291
    %v298 = vsel %vm297, 1, 0
    %v299 = vadd.s32 %v295, %v291
    %v300 = vadd.s32 %v296, %v298
    %v301 = vadd.s32 %v300, %v290
    %v302 = vadd.s32 %v301, %v292
    %v303 = vand.u32 %v280, 65535
    %v304 = vshrl.u32 %v280, 16
    %v305 = vand.u32 %v275, 65535
    %v306 = vshrl.u32 %v275, 16
    %v307 = vmul.u32 %v303, %v305
    %v308 = vmul.u32 %v303, %v306
    %v309 = vmul.u32 %v304, %v305
    %v310 = vmul.u32 %v304, %v306
    %v311 = vshll.u32 %v308, 16
    %v312 = vshrl.u32 %v308, 16
    %v313 = vshll.u32 %v309, 16
    %v314 = vshrl.u32 %v309, 16
    %vm315 = vc.u32 %v307, %v311
    %v316 = vsel %vm315, 1, 0
    %v317 = vadd.s32 %v307, %v311
    %v318 = vadd.s32 %v310, %v316
    %vm319 = vc.u32 %v317, %v313
    %v320 = vsel %vm319, 1, 0
    %v321 = vadd.s32 %v317, %v313
    %v322 = vadd.s32 %v318, %v320
    %v323 = vadd.s32 %v322, %v312
    %v324 = vadd.s32 %v323, %v314
    %v325 = vmul.u32 %v280, %v271
    %v326 = vadd.s32 %v302, %v321
    %vm327 = vc.u32 %v302, %v321
    %v328 = vadd.s32 %v324, 1
    %v329 = vsel %vm327, %v328, %v324
    %v330 = vadd.s32 %v325, %v329
    %v331 = vadd.s32 %v330, 536870912
    %v332 = vshrl.u32 %v331, 30
    %v333 = vshll.u32 %v332, 30
    %v334 = vsub.s32 %v330, %v333
    %vm335 = vcmp.lt.s32.totalorder %v334, 0
    %v336 = vsub.s32 0, %v334
    %v337 = vsel %vm335, %v336, %v334
    %v338 = vclz %v337
    %v339 = vsub.s32 %v338, 2
    %vm340 = vcmp.gt.s32.totalorder 0, %v339
    %v341 = vsel %vm340, 0, %v339
    %v342 = vsub.s32 32, %v341
    %v343 = vshll.u32 %v334, %v341
    %v344 = vshrl.u32 %v326, %v342
    %v345 = vor.u32 %v343, %v344
    %v346 = vsub.s32 4294967266, %v341
    %v347 = vadd.s32 %v346, 127
    %v348 = vshll.u32 %v347, 23
    %v349 = vor.u32 4788187, %v348
    %v350 = vand.u32 2147483647, %v349
    %v352 = vcvt.s32.f32 %v345
    %v353 = vmul.f32 %v352, %v350
    %v354 = vxor.u32 %v353, 2147483648
    %v355 = vsel %vm234, %v354, %v353
    %v356 = vsub.s32 4, %v332
    %v357 = vsel %vm234, %v356, %v332
    %v358 = vsel %vm233, %v75, %v355
    %v359 = vsel %vm233, 0, %v357
    %v360 = vmul.f32 %v358, %v358
    %v361 = vmul.f32 %v360, -0.001358992
    %v362 = vadd.f32 %v361, 0.041655596
    %v363 = vmul.f32 %v360, %v362
    %v364 = vadd.f32 %v363, -0.4999988
    %v365 = vmul.f32 %v360, %v364
    %v366 = vadd.f32 1.0, %v365
    %v367 = vmul.f32 %v358, %v358
    %v368 = vmul.f32 %v367, -0.00019511016
    %v369 = vadd.f32 %v368, 0.008332121
    %v370 = vmul.f32 %v367, %v369
    %v371 = vadd.f32 %v370, -0.16666654
    %v372 = vmul.f32 %v367, %v371
    %v373 = vadd.f32 %v372, 1.0
    %v374 = vmul.f32 %v373, %v358
    %vm375 = vweird.f32 %v75
    %v376 = vand.u32 %v359, 3
    %vm377 = vcmp.lt.s32.totalorder %v376, 2
    %vm378 = vcmp.eq.s32.totalorder %v376, 0
    %v379 = vxor.u32 %v374, 2147483648
    %v380 = vsel %vm378, %v366, %v379
    %vm381 = vcmp.eq.s32.totalorder %v376, 2
    %v382 = vxor.u32 %v366, 2147483648
    %v383 = vsel %vm381, %v382, %v374
    %v384 = vsel %vm377, %v380, %v383
    %v385 = vsel %vm375, nan, %v384
    %v386 = vand.u32 2147483647, %v76
    %vm387 = vcmp.le.f32.partialorder %v386, 0.7853982
    %vm388 = vcmp.lt.s32.totalorder %v76, 0
    %v389 = vand.u32 %v76, 2139095040
    %v390 = vshrl.u32 %v389, 23
    %v391 = vsub.s32 %v390, 127
    %v392 = vand.u32 2147483647, %v76
    %v393 = vand.u32 %v392, 8388607
    %v394 = vor.u32 %v393, 8388608
    %v395 = vsub.s32 0, %v394
    %v396 = vadd.s32 %v391, 1
    %vm397 = vcmp.gt.s32.totalorder %v396, 0
    %v398 = vsel %vm397, %v396, 0
    %v399 = vshrl.u32 %v398, 5
    %v400 = vand.u32 %v398, 31
    %v401 = vsub.s32 32, %v400
    %v402 = vshrl.u32 683565275, %v401
    %v403 = vshll.u32 683565275, %v400
    %v404 = vshrl.u32 2475754826, %v401
    %v405 = vor.u32 %v403, %v404
    %v406 = vshll.u32 2475754826, %v400
    %v407 = vshrl.u32 2131351028, %v401
    %v408 = vor.u32 %v406, %v407
    %v409 = vshll.u32 2131351028, %v400
    %v410 = vshrl.u32 2102212464, %v401
    %v411 = vor.u32 %v409, %v410
    %v412 = vshll.u32 2102212464, %v400
    %v413 = vshrl.u32 920167782, %v401
    %v414 = vor.u32 %v412, %v413
    %v415 = vshll.u32 920167782, %v400
    %v416 = vshrl.u32 1326507024, %v401
    %v417 = vor.u32 %v415, %v416
    %vm418 = vcmp.lt.s32.totalorder %v399, 1
    %vm419 = vcmp.lt.s32.totalorder %v399, 2
    %vm420 = vcmp.lt.s32.totalorder %v399, 3
    %vm421 = vcmp.lt.s32.totalorder %v399, 4
    %v422 = vsel %vm418, %v402, %v405
    %v423 = vsel %vm421, %v411, 2102212464
    %v424 = vsel %vm420, %v408, %v423
    %v425 = vsel %vm419, %v422, %v424
    %v426 = vsel %vm418, %v405, %v408
    %v427 = vsel %vm421, %v414, 920167782
    %v428 = vsel %vm420, %v411, %v427
    %v429 = vsel %vm419, %v426, %v428
    %v430 = vsel %vm418, %v408, %v411
    %v431 = vsel %vm421, %v417, 1326507024
    %v432 = vsel %vm420, %v414, %v431
    %v433 = vsel %vm419, %v430, %v432
    %v434 = vshll.u32 %v394, 8
    %v435 = vand.u32 %v434, 65535
    %v436 = vshrl.u32 %v434, 16
    %v437 = vand.u32 %v433, 65535
    %v438 = vshrl.u32 %v433, 16
    %v439 = vmul.u32 %v435, %v437
    %v440 = vmul.u32 %v435, %v438
    %v441 = vmul.u32 %v436, %v437
    %v442 = vmul.u32 %v436, %v438
    %v443 = vshll.u32 %v440, 16
    %v444 = vshrl.u32 %v440, 16
    %v445 = vshll.u32 %v441, 16
    %v446 = vshrl.u32 %v441, 16
    %vm447 = vc.u32 %v439, %v443
    %v448 = vsel %vm447, 1, 0
    %v449 = vadd.s32 %v439, %v443
    %v450 = vadd.s32 %v442, %v448
    %vm451 = vc.u32 %v449, %v445
    %v452 = vsel %vm451, 1, 0
    %v453 = vadd.s32 %v449, %v445
    %v454 = vadd.s32 %v450, %v452
    %v455 = vadd.s32 %v454, %v444
    %v456 = vadd.s32 %v455, %v446
    %v457 = vand.u32 %v434, 65535
    %v458 = vshrl.u32 %v434, 16
    %v459 = vand.u32 %v429, 65535
    %v460 = vshrl.u32 %v429, 16
    %v461 = vmul.u32 %v457, %v459
    %v462 = vmul.u32 %v457, %v460
    %v463 = vmul.u32 %v458, %v459
    %v464 = vmul.u32 %v458, %v460
    %v465 = vshll.u32 %v462, 16
    %v466 = vshrl.u32 %v462, 16
    %v467 = vshll.u32 %v463, 16
    %v468 = vshrl.u32 %v463, 16
    %vm469 = vc.u32 %v461, %v465
    %v470 = vsel %vm469, 1, 0
    %v471 = vadd.s32 %v461, %v465
    %v472 = vadd.s32 %v464, %v470
    %vm473 = vc.u32 %v471, %v467
    %v474 = vsel %vm473, 1, 0
    %v475 = vadd.s32 %v471, %v467
    %v476 = vadd.s32 %v472, %v474
    %v477 = vadd.s32 %v476, %v466
    %v478 = vadd.s32 %v477, %v468
    %v479 = vmul.u32 %v434, %v425
    %v480 = vadd.s32 %v456, %v475
    %vm481 = vc.u32 %v456, %v475
    %v482 = vadd.s32 %v478, 1
    %v483 = vsel %vm481, %v482, %v478
    %v484 = vadd.s32 %v479, %v483
    %v485 = vadd.s32 %v484, 536870912
    %v486 = vshrl.u32 %v485, 30
    %v487 = vshll.u32 %v486, 30
    %v488 = vsub.s32 %v484, %v487
    %vm489 = vcmp.lt.s32.totalorder %v488, 0
    %v490 = vsub.s32 0, %v488
    %v491 = vsel %vm489, %v490, %v488
    %v492 = vclz %v491
    %v493 = vsub.s32 %v492, 2
    %vm494 = vcmp.gt.s32.totalorder 0, %v493
    %v495 = vsel %vm494, 0, %v493
    %v496 = vsub.s32 32, %v495
    %v497 = vshll.u32 %v488, %v495
    %v498 = vshrl.u32 %v480, %v496
    %v499 = vor.u32 %v497, %v498
    %v500 = vsub.s32 4294967266, %v495
    %v501 = vadd.s32 %v500, 127
    %v502 = vshll.u32 %v501, 23
    %v503 = vor.u32 4788187, %v502
    %v504 = vand.u32 2147483647, %v503
    %v506 = vcvt.s32.f32 %v499
    %v507 = vmul.f32 %v506, %v504
    %v508 = vxor.u32 %v507, 2147483648
    %v509 = vsel %vm388, %v508, %v507
    %v510 = vsub.s32 4, %v486
    %v511 = vsel %vm388, %v510, %v486
    %v512 = vsel %vm387, %v76, %v509
    %v513 = vsel %vm387, 0, %v511
    %v514 = vmul.f32 %v512, %v512
    %v515 = vmul.f32 %v514, -0.001358992
    %v516 = vadd.f32 %v515, 0.041655596
    %v517 = vmul.f32 %v514, %v516
    %v518 = vadd.f32 %v517, -0.4999988
    %v519 = vmul.f32 %v514, %v518
    %v520 = vadd.f32 1.0, %v519
    %v521 = vmul.f32 %v512, %v512
    %v522 = vmul.f32 %v521, -0.00019511016
    %v523 = vadd.f32 %v522, 0.008332121
    %v524 = vmul.f32 %v521, %v523
    %v525 = vadd.f32 %v524, -0.16666654
    %v526 = vmul.f32 %v521, %v525
    %v527 = vadd.f32 %v526, 1.0
    %v528 = vmul.f32 %v527, %v512
    %vm529 = vweird.f32 %v76
    %v530 = vand.u32 %v513, 3
    %vm531 = vcmp.lt.s32.totalorder %v530, 2
    %vm532 = vcmp.eq.s32.totalorder %v530, 0
    %v533 = vxor.u32 %v528, 2147483648
    %v534 = vsel %vm532, %v520, %v533
    %vm535 = vcmp.eq.s32.totalorder %v530, 2
    %v536 = vxor.u32 %v520, 2147483648
    %v537 = vsel %vm535, %v536, %v528
    %v538 = vsel %vm531, %v534, %v537
    %v539 = vsel %vm529, nan, %v538
    %v540 = vand.u32 2147483647, %v77
    %vm541 = vcmp.le.f32.partialorder %v540, 0.7853982
    %vm542 = vcmp.lt.s32.totalorder %v77, 0
    %v543 = vand.u32 %v77, 2139095040
    %v544 = vshrl.u32 %v543, 23
    %v545 = vsub.s32 %v544, 127
    %v546 = vand.u32 2147483647, %v77
    %v547 = vand.u32 %v546, 8388607
    %v548 = vor.u32 %v547, 8388608
    %v549 = vsub.s32 0, %v548
    %v550 = vadd.s32 %v545, 1
    %vm551 = vcmp.gt.s32.totalorder %v550, 0
    %v552 = vsel %vm551, %v550, 0
    %v553 = vshrl.u32 %v552, 5
    %v554 = vand.u32 %v552, 31
    %v555 = vsub.s32 32, %v554
    %v556 = vshrl.u32 683565275, %v555
    %v557 = vshll.u32 683565275, %v554
    %v558 = vshrl.u32 2475754826, %v555
    %v559 = vor.u32 %v557, %v558
    %v560 = vshll.u32 2475754826, %v554
    %v561 = vshrl.u32 2131351028, %v555
    %v562 = vor.u32 %v560, %v561
    %v563 = vshll.u32 2131351028, %v554
    %v564 = vshrl.u32 2102212464, %v555
    %v565 = vor.u32 %v563, %v564
    %v566 = vshll.u32 2102212464, %v554
    %v567 = vshrl.u32 920167782, %v555
    %v568 = vor.u32 %v566, %v567
    %v569 = vshll.u32 920167782, %v554
    %v570 = vshrl.u32 1326507024, %v555
    %v571 = vor.u32 %v569, %v570
    %vm572 = vcmp.lt.s32.totalorder %v553, 1
    %vm573 = vcmp.lt.s32.totalorder %v553, 2
    %vm574 = vcmp.lt.s32.totalorder %v553, 3
    %vm575 = vcmp.lt.s32.totalorder %v553, 4
    %v576 = vsel %vm572, %v556, %v559
    %v577 = vsel %vm575, %v565, 2102212464
    %v578 = vsel %vm574, %v562, %v577
    %v579 = vsel %vm573, %v576, %v578
    %v580 = vsel %vm572, %v559, %v562
    %v581 = vsel %vm575, %v568, 920167782
    %v582 = vsel %vm574, %v565, %v581
    %v583 = vsel %vm573, %v580, %v582
    %v584 = vsel %vm572, %v562, %v565
    %v585 = vsel %vm575, %v571, 1326507024
    %v586 = vsel %vm574, %v568, %v585
    %v587 = vsel %vm573, %v584, %v586
    %v588 = vshll.u32 %v548, 8
    %v589 = vand.u32 %v588, 65535
    %v590 = vshrl.u32 %v588, 16
    %v591 = vand.u32 %v587, 65535
    %v592 = vshrl.u32 %v587, 16
    %v593 = vmul.u32 %v589, %v591
    %v594 = vmul.u32 %v589, %v592
    %v595 = vmul.u32 %v590, %v591
    %v596 = vmul.u32 %v590, %v592
    %v597 = vshll.u32 %v594, 16
    %v598 = vshrl.u32 %v594, 16
    %v599 = vshll.u32 %v595, 16
    %v600 = vshrl.u32 %v595, 16
    %vm601 = vc.u32 %v593, %v597
    %v602 = vsel %vm601, 1, 0
    %v603 = vadd.s32 %v593, %v597
    %v604 = vadd.s32 %v596, %v602
    %vm605 = vc.u32 %v603, %v599
    %v606 = vsel %vm605, 1, 0
    %v607 = vadd.s32 %v603, %v599
    %v608 = vadd.s32 %v604, %v606
    %v609 = vadd.s32 %v608, %v598
    %v610 = vadd.s32 %v609, %v600
    %v611 = vand.u32 %v588, 65535
    %v612 = vshrl.u32 %v588, 16
    %v613 = vand.u32 %v583, 65535
    %v614 = vshrl.u32 %v583, 16
    %v615 = vmul.u32 %v611, %v613
    %v616 = vmul.u32 %v611, %v614
    %v617 = vmul.u32 %v612, %v613
    %v618 = vmul.u32 %v612, %v614
    %v619 = vshll.u32 %v616, 16
    %v620 = vshrl.u32 %v616, 16
    %v621 = vshll.u32 %v617, 16
    %v622 = vshrl.u32 %v617, 16
    %vm623 = vc.u32 %v615, %v619
    %v624 = vsel %vm623, 1, 0
    %v625 = vadd.s32 %v615, %v619
    %v626 = vadd.s32 %v618, %v624
    %vm627 = vc.u32 %v625, %v621
    %v628 = vsel %vm627, 1, 0
    %v629 = vadd.s32 %v625, %v621
    %v630 = vadd.s32 %v626, %v628
    %v631 = vadd.s32 %v630, %v620
    %v632 = vadd.s32 %v631, %v622
    %v633 = vmul.u32 %v588, %v579
    %v634 = vadd.s32 %v610, %v629
    %vm635 = vc.u32 %v610, %v629
    %v636 = vadd.s32 %v632, 1
    %v637 = vsel %vm635, %v636, %v632
    %v638 = vadd.s32 %v633, %v637
    %v639 = vadd.s32 %v638, 536870912
    %v640 = vshrl.u32 %v639, 30
    %v641 = vshll.u32 %v640, 30
    %v642 = vsub.s32 %v638, %v641
    %vm643 = vcmp.lt.s32.totalorder %v642, 0
    %v644 = vsub.s32 0, %v642
    %v645 = vsel %vm643, %v644, %v642
    %v646 = vclz %v645
    %v647 = vsub.s32 %v646, 2
    %vm648 = vcmp.gt.s32.totalorder 0, %v647
    %v649 = vsel %vm648, 0, %v647
    %v650 = vsub.s32 32, %v649
    %v651 = vshll.u32 %v642, %v649
    %v652 = vshrl.u32 %v634, %v650
    %v653 = vor.u32 %v651, %v652
    %v654 = vsub.s32 4294967266, %v649
    %v655 = vadd.s32 %v654, 127
    %v656 = vshll.u32 %v655, 23
    %v657 = vor.u32 4788187, %v656
    %v658 = vand.u32 2147483647, %v657
    %v660 = vcvt.s32.f32 %v653
    %v661 = vmul.f32 %v660, %v658
    %v662 = vxor.u32 %v661, 2147483648
    %v663 = vsel %vm542, %v662, %v661
    %v664 = vsub.s32 4, %v640
    %v665 = vsel %vm542, %v664, %v640
    %v666 = vsel %vm541, %v77, %v663
    %v667 = vsel %vm541, 0, %v665
    %v668 = vmul.f32 %v666, %v666
    %v669 = vmul.f32 %v668, -0.001358992
    %v670 = vadd.f32 %v669, 0.041655596
    %v671 = vmul.f32 %v668, %v670
    %v672 = vadd.f32 %v671, -0.4999988
    %v673 = vmul.f32 %v668, %v672
    %v674 = vadd.f32 1.0, %v673
    %v675 = vmul.f32 %v666, %v666
    %v676 = vmul.f32 %v675, -0.00019511016
    %v677 = vadd.f32 %v676, 0.008332121
    %v678 = vmul.f32 %v675, %v677
    %v679 = vadd.f32 %v678, -0.16666654
    %v680 = vmul.f32 %v675, %v679
    %v681 = vadd.f32 %v680, 1.0
    %v682 = vmul.f32 %v681, %v666
    %vm683 = vweird.f32 %v77
    %v684 = vand.u32 %v667, 3
    %vm685 = vcmp.lt.s32.totalorder %v684, 2
    %vm686 = vcmp.eq.s32.totalorder %v684, 0
    %v687 = vxor.u32 %v682, 2147483648
    %v688 = vsel %vm686, %v674, %v687
    %vm689 = vcmp.eq.s32.totalorder %v684, 2
    %v690 = vxor.u32 %v674, 2147483648
    %v691 = vsel %vm689, %v690, %v682
    %v692 = vsel %vm685, %v688, %v691
    %v693 = vsel %vm683, nan, %v692
    %694 = vst [vmem:[#allocation7] sm:$0xff] %v231
    %695 = vst [vmem:[#allocation7 + $0x8] sm:$0xff] %v385
    %696 = vst [vmem:[#allocation7 + $0x10] sm:$0xff] %v539
    %697 = vst [vmem:[#allocation7 + $0x18] sm:$0xff] %v693
    %v698 = vand.u32 2147483647, %v74
    %vm699 = vcmp.le.f32.partialorder %v698, 0.7853982
    %vm700 = vcmp.lt.s32.totalorder %v74, 0
    %v701 = vand.u32 %v74, 2139095040
    %v702 = vshrl.u32 %v701, 23
    %v703 = vsub.s32 %v702, 127
    %v704 = vand.u32 2147483647, %v74
    %v705 = vand.u32 %v704, 8388607
    %v706 = vor.u32 %v705, 8388608
    %v707 = vsub.s32 0, %v706
    %v708 = vadd.s32 %v703, 1
    %vm709 = vcmp.gt.s32.totalorder %v708, 0
    %v710 = vsel %vm709, %v708, 0
    %v711 = vshrl.u32 %v710, 5
    %v712 = vand.u32 %v710, 31
    %v713 = vsub.s32 32, %v712
    %v714 = vshrl.u32 683565275, %v713
    %v715 = vshll.u32 683565275, %v712
    %v716 = vshrl.u32 2475754826, %v713
    %v717 = vor.u32 %v715, %v716
    %v718 = vshll.u32 2475754826, %v712
    %v719 = vshrl.u32 2131351028, %v713
    %v720 = vor.u32 %v718, %v719
    %v721 = vshll.u32 2131351028, %v712
    %v722 = vshrl.u32 2102212464, %v713
    %v723 = vor.u32 %v721, %v722
    %v724 = vshll.u32 2102212464, %v712
    %v725 = vshrl.u32 920167782, %v713
    %v726 = vor.u32 %v724, %v725
    %v727 = vshll.u32 920167782, %v712
    %v728 = vshrl.u32 1326507024, %v713
    %v729 = vor.u32 %v727, %v728
    %vm730 = vcmp.lt.s32.totalorder %v711, 1
    %vm731 = vcmp.lt.s32.totalorder %v711, 2
    %vm732 = vcmp.lt.s32.totalorder %v711, 3
    %vm733 = vcmp.lt.s32.totalorder %v711, 4
    %v734 = vsel %vm730, %v714, %v717
    %v735 = vsel %vm733, %v723, 2102212464
    %v736 = vsel %vm732, %v720, %v735
    %v737 = vsel %vm731, %v734, %v736
    %v738 = vsel %vm730, %v717, %v720
    %v739 = vsel %vm733, %v726, 920167782
    %v740 = vsel %vm732, %v723, %v739
    %v741 = vsel %vm731, %v738, %v740
    %v742 = vsel %vm730, %v720, %v723
    %v743 = vsel %vm733, %v729, 1326507024
    %v744 = vsel %vm732, %v726, %v743
    %v745 = vsel %vm731, %v742, %v744
    %v746 = vshll.u32 %v706, 8
    %v747 = vand.u32 %v746, 65535
    %v748 = vshrl.u32 %v746, 16
    %v749 = vand.u32 %v745, 65535
    %v750 = vshrl.u32 %v745, 16
    %v751 = vmul.u32 %v747, %v749
    %v752 = vmul.u32 %v747, %v750
    %v753 = vmul.u32 %v748, %v749
    %v754 = vmul.u32 %v748, %v750
    %v755 = vshll.u32 %v752, 16
    %v756 = vshrl.u32 %v752, 16
    %v757 = vshll.u32 %v753, 16
    %v758 = vshrl.u32 %v753, 16
    %vm759 = vc.u32 %v751, %v755
    %v760 = vsel %vm759, 1, 0
    %v761 = vadd.s32 %v751, %v755
    %v762 = vadd.s32 %v754, %v760
    %vm763 = vc.u32 %v761, %v757
    %v764 = vsel %vm763, 1, 0
    %v765 = vadd.s32 %v761, %v757
    %v766 = vadd.s32 %v762, %v764
    %v767 = vadd.s32 %v766, %v756
    %v768 = vadd.s32 %v767, %v758
    %v769 = vand.u32 %v746, 65535
    %v770 = vshrl.u32 %v746, 16
    %v771 = vand.u32 %v741, 65535
    %v772 = vshrl.u32 %v741, 16
    %v773 = vmul.u32 %v769, %v771
    %v774 = vmul.u32 %v769, %v772
    %v775 = vmul.u32 %v770, %v771
    %v776 = vmul.u32 %v770, %v772
    %v777 = vshll.u32 %v774, 16
    %v778 = vshrl.u32 %v774, 16
    %v779 = vshll.u32 %v775, 16
    %v780 = vshrl.u32 %v775, 16
    %vm781 = vc.u32 %v773, %v777
    %v782 = vsel %vm781, 1, 0
    %v783 = vadd.s32 %v773, %v777
    %v784 = vadd.s32 %v776, %v782
    %vm785 = vc.u32 %v783, %v779
    %v786 = vsel %vm785, 1, 0
    %v787 = vadd.s32 %v783, %v779
    %v788 = vadd.s32 %v784, %v786
    %v789 = vadd.s32 %v788, %v778
    %v790 = vadd.s32 %v789, %v780
    %v791 = vmul.u32 %v746, %v737
    %v792 = vadd.s32 %v768, %v787
    %vm793 = vc.u32 %v768, %v787
    %v794 = vadd.s32 %v790, 1
    %v795 = vsel %vm793, %v794, %v790
    %v796 = vadd.s32 %v791, %v795
    %v797 = vadd.s32 %v796, 536870912
    %v798 = vshrl.u32 %v797, 30
    %v799 = vshll.u32 %v798, 30
    %v800 = vsub.s32 %v796, %v799
    %vm801 = vcmp.lt.s32.totalorder %v800, 0
    %v802 = vsub.s32 0, %v800
    %v803 = vsel %vm801, %v802, %v800
    %v804 = vclz %v803
    %v805 = vsub.s32 %v804, 2
    %vm806 = vcmp.gt.s32.totalorder 0, %v805
    %v807 = vsel %vm806, 0, %v805
    %v808 = vsub.s32 32, %v807
    %v809 = vshll.u32 %v800, %v807
    %v810 = vshrl.u32 %v792, %v808
    %v811 = vor.u32 %v809, %v810
    %v812 = vsub.s32 4294967266, %v807
    %v813 = vadd.s32 %v812, 127
    %v814 = vshll.u32 %v813, 23
    %v815 = vor.u32 4788187, %v814
    %v816 = vand.u32 2147483647, %v815
    %v818 = vcvt.s32.f32 %v811
    %v819 = vmul.f32 %v818, %v816
    %v820 = vxor.u32 %v819, 2147483648
    %v821 = vsel %vm700, %v820, %v819
    %v822 = vsub.s32 4, %v798
    %v823 = vsel %vm700, %v822, %v798
    %v824 = vsel %vm699, %v74, %v821
    %v825 = vsel %vm699, 0, %v823
    %v826 = vmul.f32 %v824, %v824
    %v827 = vmul.f32 %v826, -0.001358992
    %v828 = vadd.f32 %v827, 0.041655596
    %v829 = vmul.f32 %v826, %v828
    %v830 = vadd.f32 %v829, -0.4999988
    %v831 = vmul.f32 %v826, %v830
    %v832 = vadd.f32 1.0, %v831
    %v833 = vmul.f32 %v824, %v824
    %v834 = vmul.f32 %v833, -0.00019511016
    %v835 = vadd.f32 %v834, 0.008332121
    %v836 = vmul.f32 %v833, %v835
    %v837 = vadd.f32 %v836, -0.16666654
    %v838 = vmul.f32 %v833, %v837
    %v839 = vadd.f32 %v838, 1.0
    %v840 = vmul.f32 %v839, %v824
    %vm841 = vweird.f32 %v74
    %v842 = vadd.s32 %v825, 3
    %v843 = vand.u32 %v842, 3
    %vm844 = vcmp.lt.s32.totalorder %v843, 2
    %vm845 = vcmp.eq.s32.totalorder %v843, 0
    %v846 = vxor.u32 %v840, 2147483648
    %v847 = vsel %vm845, %v832, %v846
    %vm848 = vcmp.eq.s32.totalorder %v843, 2
    %v849 = vxor.u32 %v832, 2147483648
    %v850 = vsel %vm848, %v849, %v840
    %v851 = vsel %vm844, %v847, %v850
    %v852 = vsel %vm841, nan, %v851
    %v853 = vand.u32 2147483647, %v75
    %vm854 = vcmp.le.f32.partialorder %v853, 0.7853982
    %vm855 = vcmp.lt.s32.totalorder %v75, 0
    %v856 = vand.u32 %v75, 2139095040
    %v857 = vshrl.u32 %v856, 23
    %v858 = vsub.s32 %v857, 127
    %v859 = vand.u32 2147483647, %v75
    %v860 = vand.u32 %v859, 8388607
    %v861 = vor.u32 %v860, 8388608
    %v862 = vsub.s32 0, %v861
    %v863 = vadd.s32 %v858, 1
    %vm864 = vcmp.gt.s32.totalorder %v863, 0
    %v865 = vsel %vm864, %v863, 0
    %v866 = vshrl.u32 %v865, 5
    %v867 = vand.u32 %v865, 31
    %v868 = vsub.s32 32, %v867
    %v869 = vshrl.u32 683565275, %v868
    %v870 = vshll.u32 683565275, %v867
    %v871 = vshrl.u32 2475754826, %v868
    %v872 = vor.u32 %v870, %v871
    %v873 = vshll.u32 2475754826, %v867
    %v874 = vshrl.u32 2131351028, %v868
    %v875 = vor.u32 %v873, %v874
    %v876 = vshll.u32 2131351028, %v867
    %v877 = vshrl.u32 2102212464, %v868
    %v878 = vor.u32 %v876, %v877
    %v879 = vshll.u32 2102212464, %v867
    %v880 = vshrl.u32 920167782, %v868
    %v881 = vor.u32 %v879, %v880
    %v882 = vshll.u32 920167782, %v867
    %v883 = vshrl.u32 1326507024, %v868
    %v884 = vor.u32 %v882, %v883
    %vm885 = vcmp.lt.s32.totalorder %v866, 1
    %vm886 = vcmp.lt.s32.totalorder %v866, 2
    %vm887 = vcmp.lt.s32.totalorder %v866, 3
    %vm888 = vcmp.lt.s32.totalorder %v866, 4
    %v889 = vsel %vm885, %v869, %v872
    %v890 = vsel %vm888, %v878, 2102212464
    %v891 = vsel %vm887, %v875, %v890
    %v892 = vsel %vm886, %v889, %v891
    %v893 = vsel %vm885, %v872, %v875
    %v894 = vsel %vm888, %v881, 920167782
    %v895 = vsel %vm887, %v878, %v894
    %v896 = vsel %vm886, %v893, %v895
    %v897 = vsel %vm885, %v875, %v878
    %v898 = vsel %vm888, %v884, 1326507024
    %v899 = vsel %vm887, %v881, %v898
    %v900 = vsel %vm886, %v897, %v899
    %v901 = vshll.u32 %v861, 8
    %v902 = vand.u32 %v901, 65535
    %v903 = vshrl.u32 %v901, 16
    %v904 = vand.u32 %v900, 65535
    %v905 = vshrl.u32 %v900, 16
    %v906 = vmul.u32 %v902, %v904
    %v907 = vmul.u32 %v902, %v905
    %v908 = vmul.u32 %v903, %v904
    %v909 = vmul.u32 %v903, %v905
    %v910 = vshll.u32 %v907, 16
    %v911 = vshrl.u32 %v907, 16
    %v912 = vshll.u32 %v908, 16
    %v913 = vshrl.u32 %v908, 16
    %vm914 = vc.u32 %v906, %v910
    %v915 = vsel %vm914, 1, 0
    %v916 = vadd.s32 %v906, %v910
    %v917 = vadd.s32 %v909, %v915
    %vm918 = vc.u32 %v916, %v912
    %v919 = vsel %vm918, 1, 0
    %v920 = vadd.s32 %v916, %v912
    %v921 = vadd.s32 %v917, %v919
    %v922 = vadd.s32 %v921, %v911
    %v923 = vadd.s32 %v922, %v913
    %v924 = vand.u32 %v901, 65535
    %v925 = vshrl.u32 %v901, 16
    %v926 = vand.u32 %v896, 65535
    %v927 = vshrl.u32 %v896, 16
    %v928 = vmul.u32 %v924, %v926
    %v929 = vmul.u32 %v924, %v927
    %v930 = vmul.u32 %v925, %v926
    %v931 = vmul.u32 %v925, %v927
    %v932 = vshll.u32 %v929, 16
    %v933 = vshrl.u32 %v929, 16
    %v934 = vshll.u32 %v930, 16
    %v935 = vshrl.u32 %v930, 16
    %vm936 = vc.u32 %v928, %v932
    %v937 = vsel %vm936, 1, 0
    %v938 = vadd.s32 %v928, %v932
    %v939 = vadd.s32 %v931, %v937
    %vm940 = vc.u32 %v938, %v934
    %v941 = vsel %vm940, 1, 0
    %v942 = vadd.s32 %v938, %v934
    %v943 = vadd.s32 %v939, %v941
    %v944 = vadd.s32 %v943, %v933
    %v945 = vadd.s32 %v944, %v935
    %v946 = vmul.u32 %v901, %v892
    %v947 = vadd.s32 %v923, %v942
    %vm948 = vc.u32 %v923, %v942
    %v949 = vadd.s32 %v945, 1
    %v950 = vsel %vm948, %v949, %v945
    %v951 = vadd.s32 %v946, %v950
    %v952 = vadd.s32 %v951, 536870912
    %v953 = vshrl.u32 %v952, 30
    %v954 = vshll.u32 %v953, 30
    %v955 = vsub.s32 %v951, %v954
    %vm956 = vcmp.lt.s32.totalorder %v955, 0
    %v957 = vsub.s32 0, %v955
    %v958 = vsel %vm956, %v957, %v955
    %v959 = vclz %v958
    %v960 = vsub.s32 %v959, 2
    %vm961 = vcmp.gt.s32.totalorder 0, %v960
    %v962 = vsel %vm961, 0, %v960
    %v963 = vsub.s32 32, %v962
    %v964 = vshll.u32 %v955, %v962
    %v965 = vshrl.u32 %v947, %v963
    %v966 = vor.u32 %v964, %v965
    %v967 = vsub.s32 4294967266, %v962
    %v968 = vadd.s32 %v967, 127
    %v969 = vshll.u32 %v968, 23
    %v970 = vor.u32 4788187, %v969
    %v971 = vand.u32 2147483647, %v970
    %v973 = vcvt.s32.f32 %v966
    %v974 = vmul.f32 %v973, %v971
    %v975 = vxor.u32 %v974, 2147483648
    %v976 = vsel %vm855, %v975, %v974
    %v977 = vsub.s32 4, %v953
    %v978 = vsel %vm855, %v977, %v953
    %v979 = vsel %vm854, %v75, %v976
    %v980 = vsel %vm854, 0, %v978
    %v981 = vmul.f32 %v979, %v979
    %v982 = vmul.f32 %v981, -0.001358992
    %v983 = vadd.f32 %v982, 0.041655596
    %v984 = vmul.f32 %v981, %v983
    %v985 = vadd.f32 %v984, -0.4999988
    %v986 = vmul.f32 %v981, %v985
    %v987 = vadd.f32 1.0, %v986
    %v988 = vmul.f32 %v979, %v979
    %v989 = vmul.f32 %v988, -0.00019511016
    %v990 = vadd.f32 %v989, 0.008332121
    %v991 = vmul.f32 %v988, %v990
    %v992 = vadd.f32 %v991, -0.16666654
    %v993 = vmul.f32 %v988, %v992
    %v994 = vadd.f32 %v993, 1.0
    %v995 = vmul.f32 %v994, %v979
    %vm996 = vweird.f32 %v75
    %v997 = vadd.s32 %v980, 3
    %v998 = vand.u32 %v997, 3
    %vm999 = vcmp.lt.s32.totalorder %v998, 2
    %vm1000 = vcmp.eq.s32.totalorder %v998, 0
    %v1001 = vxor.u32 %v995, 2147483648
    %v1002 = vsel %vm1000, %v987, %v1001
    %vm1003 = vcmp.eq.s32.totalorder %v998, 2
    %v1004 = vxor.u32 %v987, 2147483648
    %v1005 = vsel %vm1003, %v1004, %v995
    %v1006 = vsel %vm999, %v1002, %v1005
    %v1007 = vsel %vm996, nan, %v1006
    %v1008 = vand.u32 2147483647, %v76
    %vm1009 = vcmp.le.f32.partialorder %v1008, 0.7853982
    %vm1010 = vcmp.lt.s32.totalorder %v76, 0
    %v1011 = vand.u32 %v76, 2139095040
    %v1012 = vshrl.u32 %v1011, 23
    %v1013 = vsub.s32 %v1012, 127
    %v1014 = vand.u32 2147483647, %v76
    %v1015 = vand.u32 %v1014, 8388607
    %v1016 = vor.u32 %v1015, 8388608
    %v1017 = vsub.s32 0, %v1016
    %v1018 = vadd.s32 %v1013, 1
    %vm1019 = vcmp.gt.s32.totalorder %v1018, 0
    %v1020 = vsel %vm1019, %v1018, 0
    %v1021 = vshrl.u32 %v1020, 5
    %v1022 = vand.u32 %v1020, 31
    %v1023 = vsub.s32 32, %v1022
    %v1024 = vshrl.u32 683565275, %v1023
    %v1025 = vshll.u32 683565275, %v1022
    %v1026 = vshrl.u32 2475754826, %v1023
    %v1027 = vor.u32 %v1025, %v1026
    %v1028 = vshll.u32 2475754826, %v1022
    %v1029 = vshrl.u32 2131351028, %v1023
    %v1030 = vor.u32 %v1028, %v1029
    %v1031 = vshll.u32 2131351028, %v1022
    %v1032 = vshrl.u32 2102212464, %v1023
    %v1033 = vor.u32 %v1031, %v1032
    %v1034 = vshll.u32 2102212464, %v1022
    %v1035 = vshrl.u32 920167782, %v1023
    %v1036 = vor.u32 %v1034, %v1035
    %v1037 = vshll.u32 920167782, %v1022
    %v1038 = vshrl.u32 1326507024, %v1023
    %v1039 = vor.u32 %v1037, %v1038
    %vm1040 = vcmp.lt.s32.totalorder %v1021, 1
    %vm1041 = vcmp.lt.s32.totalorder %v1021, 2
    %vm1042 = vcmp.lt.s32.totalorder %v1021, 3
    %vm1043 = vcmp.lt.s32.totalorder %v1021, 4
    %v1044 = vsel %vm1040, %v1024, %v1027
    %v1045 = vsel %vm1043, %v1033, 2102212464
    %v1046 = vsel %vm1042, %v1030, %v1045
    %v1047 = vsel %vm1041, %v1044, %v1046
    %v1048 = vsel %vm1040, %v1027, %v1030
    %v1049 = vsel %vm1043, %v1036, 920167782
    %v1050 = vsel %vm1042, %v1033, %v1049
    %v1051 = vsel %vm1041, %v1048, %v1050
    %v1052 = vsel %vm1040, %v1030, %v1033
    %v1053 = vsel %vm1043, %v1039, 1326507024
    %v1054 = vsel %vm1042, %v1036, %v1053
    %v1055 = vsel %vm1041, %v1052, %v1054
    %v1056 = vshll.u32 %v1016, 8
    %v1057 = vand.u32 %v1056, 65535
    %v1058 = vshrl.u32 %v1056, 16
    %v1059 = vand.u32 %v1055, 65535
    %v1060 = vshrl.u32 %v1055, 16
    %v1061 = vmul.u32 %v1057, %v1059
    %v1062 = vmul.u32 %v1057, %v1060
    %v1063 = vmul.u32 %v1058, %v1059
    %v1064 = vmul.u32 %v1058, %v1060
    %v1065 = vshll.u32 %v1062, 16
    %v1066 = vshrl.u32 %v1062, 16
    %v1067 = vshll.u32 %v1063, 16
    %v1068 = vshrl.u32 %v1063, 16
    %vm1069 = vc.u32 %v1061, %v1065
    %v1070 = vsel %vm1069, 1, 0
    %v1071 = vadd.s32 %v1061, %v1065
    %v1072 = vadd.s32 %v1064, %v1070
    %vm1073 = vc.u32 %v1071, %v1067
    %v1074 = vsel %vm1073, 1, 0
    %v1075 = vadd.s32 %v1071, %v1067
    %v1076 = vadd.s32 %v1072, %v1074
    %v1077 = vadd.s32 %v1076, %v1066
    %v1078 = vadd.s32 %v1077, %v1068
    %v1079 = vand.u32 %v1056, 65535
    %v1080 = vshrl.u32 %v1056, 16
    %v1081 = vand.u32 %v1051, 65535
    %v1082 = vshrl.u32 %v1051, 16
    %v1083 = vmul.u32 %v1079, %v1081
    %v1084 = vmul.u32 %v1079, %v1082
    %v1085 = vmul.u32 %v1080, %v1081
    %v1086 = vmul.u32 %v1080, %v1082
    %v1087 = vshll.u32 %v1084, 16
    %v1088 = vshrl.u32 %v1084, 16
    %v1089 = vshll.u32 %v1085, 16
    %v1090 = vshrl.u32 %v1085, 16
    %vm1091 = vc.u32 %v1083, %v1087
    %v1092 = vsel %vm1091, 1, 0
    %v1093 = vadd.s32 %v1083, %v1087
    %v1094 = vadd.s32 %v1086, %v1092
    %vm1095 = vc.u32 %v1093, %v1089
    %v1096 = vsel %vm1095, 1, 0
    %v1097 = vadd.s32 %v1093, %v1089
    %v1098 = vadd.s32 %v1094, %v1096
    %v1099 = vadd.s32 %v1098, %v1088
    %v1100 = vadd.s32 %v1099, %v1090
    %v1101 = vmul.u32 %v1056, %v1047
    %v1102 = vadd.s32 %v1078, %v1097
    %vm1103 = vc.u32 %v1078, %v1097
    %v1104 = vadd.s32 %v1100, 1
    %v1105 = vsel %vm1103, %v1104, %v1100
    %v1106 = vadd.s32 %v1101, %v1105
    %v1107 = vadd.s32 %v1106, 536870912
    %v1108 = vshrl.u32 %v1107, 30
    %v1109 = vshll.u32 %v1108, 30
    %v1110 = vsub.s32 %v1106, %v1109
    %vm1111 = vcmp.lt.s32.totalorder %v1110, 0
    %v1112 = vsub.s32 0, %v1110
    %v1113 = vsel %vm1111, %v1112, %v1110
    %v1114 = vclz %v1113
    %v1115 = vsub.s32 %v1114, 2
    %vm1116 = vcmp.gt.s32.totalorder 0, %v1115
    %v1117 = vsel %vm1116, 0, %v1115
    %v1118 = vsub.s32 32, %v1117
    %v1119 = vshll.u32 %v1110, %v1117
    %v1120 = vshrl.u32 %v1102, %v1118
    %v1121 = vor.u32 %v1119, %v1120
    %v1122 = vsub.s32 4294967266, %v1117
    %v1123 = vadd.s32 %v1122, 127
    %v1124 = vshll.u32 %v1123, 23
    %v1125 = vor.u32 4788187, %v1124
    %v1126 = vand.u32 2147483647, %v1125
    %v1128 = vcvt.s32.f32 %v1121
    %v1129 = vmul.f32 %v1128, %v1126
    %v1130 = vxor.u32 %v1129, 2147483648
    %v1131 = vsel %vm1010, %v1130, %v1129
    %v1132 = vsub.s32 4, %v1108
    %v1133 = vsel %vm1010, %v1132, %v1108
    %v1134 = vsel %vm1009, %v76, %v1131
    %v1135 = vsel %vm1009, 0, %v1133
    %v1136 = vmul.f32 %v1134, %v1134
    %v1137 = vmul.f32 %v1136, -0.001358992
    %v1138 = vadd.f32 %v1137, 0.041655596
    %v1139 = vmul.f32 %v1136, %v1138
    %v1140 = vadd.f32 %v1139, -0.4999988
    %v1141 = vmul.f32 %v1136, %v1140
    %v1142 = vadd.f32 1.0, %v1141
    %v1143 = vmul.f32 %v1134, %v1134
    %v1144 = vmul.f32 %v1143, -0.00019511016
    %v1145 = vadd.f32 %v1144, 0.008332121
    %v1146 = vmul.f32 %v1143, %v1145
    %v1147 = vadd.f32 %v1146, -0.16666654
    %v1148 = vmul.f32 %v1143, %v1147
    %v1149 = vadd.f32 %v1148, 1.0
    %v1150 = vmul.f32 %v1149, %v1134
    %vm1151 = vweird.f32 %v76
    %v1152 = vadd.s32 %v1135, 3
    %v1153 = vand.u32 %v1152, 3
    %vm1154 = vcmp.lt.s32.totalorder %v1153, 2
    %vm1155 = vcmp.eq.s32.totalorder %v1153, 0
    %v1156 = vxor.u32 %v1150, 2147483648
    %v1157 = vsel %vm1155, %v1142, %v1156
    %vm1158 = vcmp.eq.s32.totalorder %v1153, 2
    %v1159 = vxor.u32 %v1142, 2147483648
    %v1160 = vsel %vm1158, %v1159, %v1150
    %v1161 = vsel %vm1154, %v1157, %v1160
    %v1162 = vsel %vm1151, nan, %v1161
    %v1163 = vand.u32 2147483647, %v77
    %vm1164 = vcmp.le.f32.partialorder %v1163, 0.7853982
    %vm1165 = vcmp.lt.s32.totalorder %v77, 0
    %v1166 = vand.u32 %v77, 2139095040
    %v1167 = vshrl.u32 %v1166, 23
    %v1168 = vsub.s32 %v1167, 127
    %v1169 = vand.u32 2147483647, %v77
    %v1170 = vand.u32 %v1169, 8388607
    %v1171 = vor.u32 %v1170, 8388608
    %v1172 = vsub.s32 0, %v1171
    %v1173 = vadd.s32 %v1168, 1
    %vm1174 = vcmp.gt.s32.totalorder %v1173, 0
    %v1175 = vsel %vm1174, %v1173, 0
    %v1176 = vshrl.u32 %v1175, 5
    %v1177 = vand.u32 %v1175, 31
    %v1178 = vsub.s32 32, %v1177
    %v1179 = vshrl.u32 683565275, %v1178
    %v1180 = vshll.u32 683565275, %v1177
    %v1181 = vshrl.u32 2475754826, %v1178
    %v1182 = vor.u32 %v1180, %v1181
    %v1183 = vshll.u32 2475754826, %v1177
    %v1184 = vshrl.u32 2131351028, %v1178
    %v1185 = vor.u32 %v1183, %v1184
    %v1186 = vshll.u32 2131351028, %v1177
    %v1187 = vshrl.u32 2102212464, %v1178
    %v1188 = vor.u32 %v1186, %v1187
    %v1189 = vshll.u32 2102212464, %v1177
    %v1190 = vshrl.u32 920167782, %v1178
    %v1191 = vor.u32 %v1189, %v1190
    %v1192 = vshll.u32 920167782, %v1177
    %v1193 = vshrl.u32 1326507024, %v1178
    %v1194 = vor.u32 %v1192, %v1193
    %vm1195 = vcmp.lt.s32.totalorder %v1176, 1
    %vm1196 = vcmp.lt.s32.totalorder %v1176, 2
    %vm1197 = vcmp.lt.s32.totalorder %v1176, 3
    %vm1198 = vcmp.lt.s32.totalorder %v1176, 4
    %v1199 = vsel %vm1195, %v1179, %v1182
    %v1200 = vsel %vm1198, %v1188, 2102212464
    %v1201 = vsel %vm1197, %v1185, %v1200
    %v1202 = vsel %vm1196, %v1199, %v1201
    %v1203 = vsel %vm1195, %v1182, %v1185
    %v1204 = vsel %vm1198, %v1191, 920167782
    %v1205 = vsel %vm1197, %v1188, %v1204
    %v1206 = vsel %vm1196, %v1203, %v1205
    %v1207 = vsel %vm1195, %v1185, %v1188
    %v1208 = vsel %vm1198, %v1194, 1326507024
    %v1209 = vsel %vm1197, %v1191, %v1208
    %v1210 = vsel %vm1196, %v1207, %v1209
    %v1211 = vshll.u32 %v1171, 8
    %v1212 = vand.u32 %v1211, 65535
    %v1213 = vshrl.u32 %v1211, 16
    %v1214 = vand.u32 %v1210, 65535
    %v1215 = vshrl.u32 %v1210, 16
    %v1216 = vmul.u32 %v1212, %v1214
    %v1217 = vmul.u32 %v1212, %v1215
    %v1218 = vmul.u32 %v1213, %v1214
    %v1219 = vmul.u32 %v1213, %v1215
    %v1220 = vshll.u32 %v1217, 16
    %v1221 = vshrl.u32 %v1217, 16
    %v1222 = vshll.u32 %v1218, 16
    %v1223 = vshrl.u32 %v1218, 16
    %vm1224 = vc.u32 %v1216, %v1220
    %v1225 = vsel %vm1224, 1, 0
    %v1226 = vadd.s32 %v1216, %v1220
    %v1227 = vadd.s32 %v1219, %v1225
    %vm1228 = vc.u32 %v1226, %v1222
    %v1229 = vsel %vm1228, 1, 0
    %v1230 = vadd.s32 %v1226, %v1222
    %v1231 = vadd.s32 %v1227, %v1229
    %v1232 = vadd.s32 %v1231, %v1221
    %v1233 = vadd.s32 %v1232, %v1223
    %v1234 = vand.u32 %v1211, 65535
    %v1235 = vshrl.u32 %v1211, 16
    %v1236 = vand.u32 %v1206, 65535
    %v1237 = vshrl.u32 %v1206, 16
    %v1238 = vmul.u32 %v1234, %v1236
    %v1239 = vmul.u32 %v1234, %v1237
    %v1240 = vmul.u32 %v1235, %v1236
    %v1241 = vmul.u32 %v1235, %v1237
    %v1242 = vshll.u32 %v1239, 16
    %v1243 = vshrl.u32 %v1239, 16
    %v1244 = vshll.u32 %v1240, 16
    %v1245 = vshrl.u32 %v1240, 16
    %vm1246 = vc.u32 %v1238, %v1242
    %v1247 = vsel %vm1246, 1, 0
    %v1248 = vadd.s32 %v1238, %v1242
    %v1249 = vadd.s32 %v1241, %v1247
    %vm1250 = vc.u32 %v1248, %v1244
    %v1251 = vsel %vm1250, 1, 0
    %v1252 = vadd.s32 %v1248, %v1244
    %v1253 = vadd.s32 %v1249, %v1251
    %v1254 = vadd.s32 %v1253, %v1243
    %v1255 = vadd.s32 %v1254, %v1245
    %v1256 = vmul.u32 %v1211, %v1202
    %v1257 = vadd.s32 %v1233, %v1252
    %vm1258 = vc.u32 %v1233, %v1252
    %v1259 = vadd.s32 %v1255, 1
    %v1260 = vsel %vm1258, %v1259, %v1255
    %v1261 = vadd.s32 %v1256, %v1260
    %v1262 = vadd.s32 %v1261, 536870912
    %v1263 = vshrl.u32 %v1262, 30
    %v1264 = vshll.u32 %v1263, 30
    %v1265 = vsub.s32 %v1261, %v1264
    %vm1266 = vcmp.lt.s32.totalorder %v1265, 0
    %v1267 = vsub.s32 0, %v1265
    %v1268 = vsel %vm1266, %v1267, %v1265
    %v1269 = vclz %v1268
    %v1270 = vsub.s32 %v1269, 2
    %vm1271 = vcmp.gt.s32.totalorder 0, %v1270
    %v1272 = vsel %vm1271, 0, %v1270
    %v1273 = vsub.s32 32, %v1272
    %v1274 = vshll.u32 %v1265, %v1272
    %v1275 = vshrl.u32 %v1257, %v1273
    %v1276 = vor.u32 %v1274, %v1275
    %v1277 = vsub.s32 4294967266, %v1272
    %v1278 = vadd.s32 %v1277, 127
    %v1279 = vshll.u32 %v1278, 23
    %v1280 = vor.u32 4788187, %v1279
    %v1281 = vand.u32 2147483647, %v1280
    %v1283 = vcvt.s32.f32 %v1276
    %v1284 = vmul.f32 %v1283, %v1281
    %v1285 = vxor.u32 %v1284, 2147483648
    %v1286 = vsel %vm1165, %v1285, %v1284
    %v1287 = vsub.s32 4, %v1263
    %v1288 = vsel %vm1165, %v1287, %v1263
    %v1289 = vsel %vm1164, %v77, %v1286
    %v1290 = vsel %vm1164, 0, %v1288
    %v1291 = vmul.f32 %v1289, %v1289
    %v1292 = vmul.f32 %v1291, -0.001358992
    %v1293 = vadd.f32 %v1292, 0.041655596
    %v1294 = vmul.f32 %v1291, %v1293
    %v1295 = vadd.f32 %v1294, -0.4999988
    %v1296 = vmul.f32 %v1291, %v1295
    %v1297 = vadd.f32 1.0, %v1296
    %v1298 = vmul.f32 %v1289, %v1289
    %v1299 = vmul.f32 %v1298, -0.00019511016
    %v1300 = vadd.f32 %v1299, 0.008332121
    %v1301 = vmul.f32 %v1298, %v1300
    %v1302 = vadd.f32 %v1301, -0.16666654
    %v1303 = vmul.f32 %v1298, %v1302
    %v1304 = vadd.f32 %v1303, 1.0
    %v1305 = vmul.f32 %v1304, %v1289
    %vm1306 = vweird.f32 %v77
    %v1307 = vadd.s32 %v1290, 3
    %v1308 = vand.u32 %v1307, 3
    %vm1309 = vcmp.lt.s32.totalorder %v1308, 2
    %vm1310 = vcmp.eq.s32.totalorder %v1308, 0
    %v1311 = vxor.u32 %v1305, 2147483648
    %v1312 = vsel %vm1310, %v1297, %v1311
    %vm1313 = vcmp.eq.s32.totalorder %v1308, 2
    %v1314 = vxor.u32 %v1297, 2147483648
    %v1315 = vsel %vm1313, %v1314, %v1305
    %v1316 = vsel %vm1309, %v1312, %v1315
    %v1317 = vsel %vm1306, nan, %v1316
    %1318 = vst [vmem:[#allocation8] sm:$0xff] %v852
    %1319 = vst [vmem:[#allocation8 + $0x8] sm:$0xff] %v1007
    %1320 = vst [vmem:[#allocation8 + $0x10] sm:$0xff] %v1162
    %1321 = vst [vmem:[#allocation8 + $0x18] sm:$0xff] %v1317
    // Predicated region
    $region18: #{_build_rope_tables.1} parent=1 // pred_check
      _
    $region19: #{_build_rope_tables.1} parent=1 // pred_check_branch
      %1323 = sbr.rel (0) target = $region21
    $region20: #{_build_rope_tables.1} parent=1 // pred_region
      %1325 = vsyncadd [#allocation4], 0
      %s1326 = sshll.u32 [#allocation7], 4
      %s1327 = int_to_ptr.vmem [resolvable:$true] %s1326
      %s1328 = sshll.u32 %s2, 4
      %s1329 = int_to_ptr.hbm [resolvable:$true] %s1328
      %1334 = dma.vmem_to_hbm [thread:$0]  %s1327, 512, %s1329, [#allocation4], 128, 128, 8
    $region21: #{_build_rope_tables.1} parent=1 // pred_fallthru
      _
    // Predicated region
    $region22: #{_build_rope_tables.1} parent=1 // pred_check
      _
    $region23: #{_build_rope_tables.1} parent=1 // pred_check_branch
      %1336 = sbr.rel (0) target = $region25
    $region24: #{_build_rope_tables.1} parent=1 // pred_region
      %1338 = vsyncadd [#allocation9], 0
      %s1339 = sshll.u32 [#allocation8], 4
      %s1340 = int_to_ptr.vmem [resolvable:$true] %s1339
      %s1341 = sshll.u32 %s3, 4
      %s1342 = int_to_ptr.hbm [resolvable:$true] %s1341
      %1347 = dma.vmem_to_hbm [thread:$0]  %s1340, 512, %s1342, [#allocation9], 128, 128, 8
    $region25: #{_build_rope_tables.1} parent=1 // pred_fallthru
      _
    // Predicated region
    $region26: #{_build_rope_tables.1} parent=1 // pred_check
      _
    $region27: #{_build_rope_tables.1} parent=1 // pred_check_branch
      %1349 = sbr.rel (0) target = $region29
    $region28: #{_build_rope_tables.1} parent=1 // pred_region
      %1351 = dma.done [#allocation4], 512
    $region29: #{_build_rope_tables.1} parent=1 // pred_fallthru
      _
    // Predicated region
    $region30: #{_build_rope_tables.1} parent=1 // pred_check
      _
    $region31: #{_build_rope_tables.1} parent=1 // pred_check_branch
      %1353 = sbr.rel (0) target = $region33
    $region32: #{_build_rope_tables.1} parent=1 // pred_region
      %1355 = dma.done [#allocation9], 512
    $region33: #{_build_rope_tables.1} parent=1 // pred_fallthru
      _
    %1356 = vsyncpa [#allocation3], 1
    %1357 = vsyncpa [#allocation6], 1
    %1358 = vsyncpa [#allocation4], 1
    %1359 = vsyncpa [#allocation9], 1

</llo_original>
